<compile_context>
chip_gen: v5e
topology: v5e:2x2
jax: 0.10.0
libtpu: 0.0.40
codegen_flags: <defaults>
</compile_context>

<pallas_src>
import functools
import math

import jax
import jax.numpy as jnp
from jax.experimental import pallas as pl
from jax.experimental.pallas import tpu as pltpu


_LANE = 128
_MAX_COLS = 4096  # keep lanes wide (>=512 typical) but tile granularity fine


def _cdiv(a, b):
    return -(-a // b)


def _round_up(a, b):
    return _cdiv(a, b) * b


def _as_pos_int(v):
    try:
        v = int(v)
        return v if v > 0 else None
    except Exception:
        return None


# -----------------------------------------------------------------------------
# Hardware detection (defensive: never crash, fall back to safe defaults)
# -----------------------------------------------------------------------------
@functools.lru_cache(maxsize=None)
def _tpu_info():
    """Returns (vmem_capacity_bytes, num_tensorcores)."""
    vmem = None
    cores = None
    try:
        info = pltpu.get_tpu_info()
        vmem = _as_pos_int(getattr(info, "vmem_capacity_bytes", None))
        for attr in ("num_cores", "tensorcore_count", "num_tensorcores",
                     "cores_per_chip"):
            cores = _as_pos_int(getattr(info, attr, None))
            if cores is not None:
                break
    except Exception:
        pass
    if cores is None:
        try:
            dev = jax.devices()[0]
            for attr in ("num_cores", "core_count"):
                cores = _as_pos_int(getattr(dev, attr, None))
                if cores is not None:
                    break
        except Exception:
            pass
    if vmem is None:
        vmem = 64 << 20  # conservative (v7x per-TC physical)
    if cores is None:
        cores = 1        # v5e / v6e default
    return vmem, cores


def _vmem_budget_bytes():
    cap, _ = _tpu_info()
    if cap >= (96 << 20):   # v5e / v6e: 128 MiB physical VMEM
        return 24 << 20
    if cap >= (48 << 20):   # v7x: 64 MiB per TensorCore
        return 20 << 20
    return 12 << 20


def _vmem_limit_bytes():
    cap, _ = _tpu_info()
    # Budget + headroom for compiler-internal scratch, never above physical.
    return min(cap, _vmem_budget_bytes() + (8 << 20))


def _single_shot_threshold_bytes():
    _, cores = _tpu_info()
    # On multi-TC chips route mid-size inputs through a >=2-step parallel grid
    # so both TensorCores are used and DMA overlaps compute.
    return (1 << 20) if cores > 1 else (3 << 20)


# -----------------------------------------------------------------------------
# Kernel
# -----------------------------------------------------------------------------
def _binary_kernel(x_ref, y_ref, o_ref, *, op_fn):
    # Whole-tile elementwise binary op on the VPU.
    o_ref[...] = op_fn(x_ref[...], y_ref[...]).astype(o_ref.dtype)


def _make_tiled_binary(op_fn, rows, cols, out_dtype, tile_rows, cost):
    """Tiled pallas_call over a (rows, cols) slab; ragged last block is clipped."""
    grid = (_cdiv(rows, tile_rows),)
    spec = pl.BlockSpec((tile_rows, cols), lambda i: (i, 0))
    return pl.pallas_call(
        functools.partial(_binary_kernel, op_fn=op_fn),
        out_shape=jax.ShapeDtypeStruct((rows, cols), out_dtype),
        grid_spec=pltpu.PrefetchScalarGridSpec(
            num_scalar_prefetch=0,
            grid=grid,
            in_specs=[spec, spec],
            out_specs=spec,
        ),
        compiler_params=pltpu.CompilerParams(
            dimension_semantics=("parallel",),  # independent blocks -> megacore shardable
            vmem_limit_bytes=_vmem_limit_bytes(),
        ),
        cost_estimate=cost,
    )


def _make_single_shot_binary(op_fn, rows, cols, out_dtype, cost):
    """Grid-less pallas_call: whole arrays live in VMEM for one invocation."""
    return pl.pallas_call(
        functools.partial(_binary_kernel, op_fn=op_fn),
        out_shape=jax.ShapeDtypeStruct((rows, cols), out_dtype),
        cost_estimate=cost,
    )


# -----------------------------------------------------------------------------
# Layout / tiling heuristics
# -----------------------------------------------------------------------------
def _sublane_for(*dtypes):
    """Sublane multiple needed for full vregs given the narrowest dtype."""
    min_bytes = min(jnp.dtype(d).itemsize for d in dtypes)
    return max(8, 32 // max(1, min_bytes))  # 8 (4B), 16 (2B), 32 (1B)


def _pick_cols(n_total):
    """Largest multiple of 128 (<= _MAX_COLS) that divides n_total."""
    best = _LANE
    c = _LANE
    limit = min(_MAX_COLS, n_total)
    while c <= limit:
        if n_total % c == 0:
            best = c
        c += _LANE
    return best


def _pick_tile_rows(rows, cols, sublane, itemsize):
    """Row-tile sized from the VMEM budget (cdiv grid, no divisor constraint)."""
    bytes_per_row = max(1, cols * itemsize)
    # 3 arrays (x, y, out) x 2 pipeline buffers per tile.
    budget = _vmem_budget_bytes()
    max_tile = max(sublane, (budget // (6 * bytes_per_row)) // sublane * sublane)
    tile = min(max_tile, _round_up(rows, sublane))

    _, n_cores = _tpu_info()
    if n_cores > 1 and rows > sublane:
        # Shape the parallel grid axis to a balanced multiple of the TC count
        # so megacore sharding doesn't leave a core ~idle on an odd step count.
        steps = _cdiv(rows, tile)
        target_steps = max(_round_up(steps, n_cores), n_cores)
        tile_even = max(sublane, _round_up(_cdiv(rows, target_steps), sublane))
        tile = max(sublane, min(tile, tile_even))
    return tile


# -----------------------------------------------------------------------------
# ModelDirect equivalent
# -----------------------------------------------------------------------------
class ModelDirectPallas:
    """JAX/Pallas analogue of ModelDirect: output = operator(x, y, **kwargs)."""

    model_name = "model_op_src_from_host"

    def __init__(self, operator, opname, shape, kwargs):
        self.testname = "pallas_eltwise_binary_" + opname + "_model_direct"
        self.operator = operator
        self.kwargs = dict(kwargs)
        self.shape = tuple(shape)

        # Bind kwargs into the binary op (e.g. torch.add's `alpha`).
        def op_fn(a, b):
            return self.operator(a, b, **self.kwargs)

        self._op_fn = op_fn

    def __call__(self, x, y):
        # TODO(synk): broadcasting between mismatched shapes is not exercised here.
        assert x.shape == y.shape == self.shape

        # Result dtype follows jnp promotion of the specialized op (matches torch
        # semantics for the tested same-dtype float cases).
        out_dtype = jax.eval_shape(
            self._op_fn,
            jax.ShapeDtypeStruct((1,), x.dtype),
            jax.ShapeDtypeStruct((1,), y.dtype),
        ).dtype

        n_elems = math.prod(self.shape)
        xf = x.reshape(-1)
        yf = y.reshape(-1)

        # Only truly non-128-aligned element counts need padding (a minimal
        # <128-elem pad); all lane-aligned sizes run pad-free with a cdiv grid.
        # TODO(synk): a masked-tail kernel could remove even this rare copy.
        n_pad = (-n_elems) % _LANE
        if n_pad:
            xf = jnp.pad(xf, (0, n_pad))
            yf = jnp.pad(yf, (0, n_pad))
        n_total = n_elems + n_pad

        # Lane-dense working slab (contiguous reshape: no data movement).
        cols = _pick_cols(n_total)
        rows = n_total // cols
        x2 = xf.reshape(rows, cols)
        y2 = yf.reshape(rows, cols)

        itemsize = max(
            jnp.dtype(d).itemsize for d in (x.dtype, y.dtype, out_dtype)
        )
        total_bytes = n_total * (
            jnp.dtype(x.dtype).itemsize
            + jnp.dtype(y.dtype).itemsize
            + jnp.dtype(out_dtype).itemsize
        )
        cost = pl.CostEstimate(
            flops=int(n_total),
            transcendentals=0,
            bytes_accessed=int(total_bytes),
        )

        if total_bytes <= _single_shot_threshold_bytes():
            # Tiny problem: one grid-less invocation, no per-step grid overhead.
            fn = _make_single_shot_binary(self._op_fn, rows, cols, out_dtype, cost)
        else:
            sublane = _sublane_for(x.dtype, y.dtype, out_dtype)
            tile_rows = _pick_tile_rows(rows, cols, sublane, itemsize)
            fn = _make_tiled_binary(self._op_fn, rows, cols, out_dtype, tile_rows, cost)

        out2 = fn(x2, y2)

        out_flat = out2.reshape(-1)
        if n_pad:
            out_flat = out_flat[:n_elems]
        return out_flat.reshape(self.shape)


# -----------------------------------------------------------------------------
# Example operators (mirroring torch.add(x, y, alpha=...) and torch.mul(x, y))
# -----------------------------------------------------------------------------
def jadd(x, y, alpha=1.0):
    return x + alpha * y


def jmul(x, y):
    return x * y


if __name__ == "__main__":
    key = jax.random.PRNGKey(0)
    keys = jax.random.split(key, 8)

    # torch.add(x, y, alpha=2.0) equivalent on the reference small NCHW shape.
    shape = (2, 4, 16, 16)  # 2048 elements -> grid-less single-shot path
    x = jax.random.normal(keys[0], shape, dtype=jnp.float32)
    y = jax.random.normal(keys[1], shape, dtype=jnp.float32)
    model_add = ModelDirectPallas(jadd, "add", shape, {"alpha": 2.0})
    out_add = jax.block_until_ready(model_add(x, y))
    assert out_add.shape == shape and out_add.dtype == jnp.float32
    assert jnp.allclose(out_add, x + 2.0 * y, atol=1e-6, rtol=1e-6)

    # torch.mul(x, y) equivalent
    model_mul = ModelDirectPallas(jmul, "mul", shape, {})
    out_mul = jax.block_until_ready(model_mul(x, y))
    assert jnp.allclose(out_mul, x * y, atol=1e-6, rtol=1e-6)

    # Medium shape to exercise the tiled (gridded, megacore-shardable) path.
    shape_med = (8, 16, 128, 128)  # 2M elems -> tiled path, multiple grid steps
    xm = jax.random.normal(keys[2], shape_med, dtype=jnp.float32)
    ym = jax.random.normal(keys[3], shape_med, dtype=jnp.float32)
    model_med = ModelDirectPallas(jadd, "add", shape_med, {"alpha": 0.5})
    out_med = jax.block_until_ready(model_med(xm, ym))
    assert out_med.shape == shape_med and out_med.dtype == jnp.float32
    assert jnp.allclose(out_med, xm + 0.5 * ym, atol=1e-6, rtol=1e-6)

    # Rows not a multiple of the tile -> cdiv grid with a clipped ragged last
    # block, no padding needed (the path the exact-divisor search used to choke on).
    shape_rag = (328, 32, 128)
    xr = jax.random.normal(keys[4], shape_rag, dtype=jnp.float32)
    yr = jax.random.normal(keys[5], shape_rag, dtype=jnp.float32)
    model_rag = ModelDirectPallas(jmul, "mul", shape_rag, {})
    out_rag = jax.block_until_ready(model_rag(xr, yr))
    assert jnp.allclose(out_rag, xr * yr, atol=1e-6, rtol=1e-6)

    # Non-128-aligned element count -> minimal pad fallback.
    shape_odd = (2, 3, 5, 7)
    xo = jax.random.normal(keys[6], shape_odd, dtype=jnp.float32)
    yo = jax.random.normal(keys[7], shape_odd, dtype=jnp.float32)
    model_odd = ModelDirectPallas(jadd, "add", shape_odd, {"alpha": 1.0})
    out_odd = jax.block_until_ready(model_odd(xo, yo))
    assert jnp.allclose(out_odd, xo + yo, atol=1e-6, rtol=1e-6)

    print("KERNEL_OK")
</pallas_src>

<mosaic_0001>
module attributes {stable_mosaic.version = 11 : i64} {
  func.func @_binary_kernel(%arg0: memref<1x2048xf32, #tpu.memory_space<vmem>>, %arg1: memref<1x2048xf32, #tpu.memory_space<vmem>>, %arg2: memref<1x2048xf32, #tpu.memory_space<vmem>>) attributes {dimension_semantics = [], scalar_prefetch = 0 : i64, scratch_operands = 0 : i64, tpu.core_type = #tpu.core_type<tc>} {
    %c0 = arith.constant 0 : index
    %c0_0 = arith.constant 0 : index
    %0 = vector.load %arg0[%c0, %c0_0] : memref<1x2048xf32, #tpu.memory_space<vmem>>, vector<1x2048xf32>
    %c0_1 = arith.constant 0 : index
    %c0_2 = arith.constant 0 : index
    %1 = vector.load %arg1[%c0_1, %c0_2] : memref<1x2048xf32, #tpu.memory_space<vmem>>, vector<1x2048xf32>
    %cst = arith.constant 2.000000e+00 : f32
    %2 = vector.broadcast %cst : f32 to vector<1x2048xf32>
    %3 = arith.mulf %2, %1 : vector<1x2048xf32>
    %4 = arith.addf %0, %3 : vector<1x2048xf32>
    %c0_3 = arith.constant 0 : index
    %c0_4 = arith.constant 0 : index
    %5 = vector.load %arg2[%c0_3, %c0_4] : memref<1x2048xf32, #tpu.memory_space<vmem>>, vector<1x2048xf32>
    tpu.vector_store %arg2[%c0_3, %c0_4], %4 {strides = array<i32>} : memref<1x2048xf32, #tpu.memory_space<vmem>>, vector<1x2048xf32>,
    return
  }
}

</mosaic_0001>

<llo_original>
// kernel: tpu_custom_call.1
$region0: #{tpu_custom_call.1}
  #allocation0 [shape = 'u32[]', space=smem, size = 0x4, offset = 0x4, fixed_abs, tag = 'smem constant byte address 0x4 - core index']
  #allocation1 [shape = 'u32[72,128]{1,0:T(1,128)}', space=vmem, size = 0x9000, scoped, tag = 'internal scratch']
  %s0 = inlined_call_operand.hbm [shape: f32[1,2048], index: 0, kind: input, shape index: {}]
  %s1 = inlined_call_operand.hbm [shape: f32[1,2048], index: 1, kind: input, shape index: {}]
  %s2 = inlined_call_operand.hbm [shape: f32[1,2048], index: 2, kind: output, shape index: {}]
  %s3 = sld [smem:[#allocation0]]
  $region26: #{tpu_custom_call.1} parent=0
    _
  %s5 = ssub.s32 1, %s3
  %s6 = scalar_select 0, %s5, %s3
  $region1: #{tpu_custom_call.1} parent=0
    #allocation2 [shape = 'u8[8192]{0}', space=vmem, size = 0x2000, scoped, tag = 'input window, operand 0, single buffered']
    #allocation3 [shape = 's32[1]{0}', space=sflag, size = 0x4, scoped, tag = 'scoped memory for tpu_custom_call.1']
    #allocation4 [shape = 's32[1]{0}', space=sflag, size = 0x4, scoped, tag = 'scoped memory for tpu_custom_call.1']
    #allocation5 [shape = 'u8[8192]{0}', space=vmem, size = 0x2000, scoped, tag = 'input window, operand 1, single buffered']
    #allocation6 [shape = 's32[1]{0}', space=sflag, size = 0x4, scoped, tag = 'scoped memory for tpu_custom_call.1']
    #allocation7 [shape = 'u8[8192]{0}', space=vmem, size = 0x2000, scoped, tag = 'output window, operand 0, single buffered']
    %7 = vsyncpa [#allocation3], 0
    %8 = vsyncpa [#allocation6], 0
    %9 = vsyncpa [#allocation4], 0
    // Predicated region
    $region2: #{tpu_custom_call.1} parent=1 // pred_check
      _
    $region3: #{tpu_custom_call.1} parent=1 // pred_check_branch
      %11 = sbr.rel (0) target = $region5
    $region4: #{tpu_custom_call.1} parent=1 // pred_region
      %13 = vsyncadd [#allocation3], 0
      %s15 = sshll.u32 %s0, 4
      %s16 = int_to_ptr.hbm [resolvable:$true] %s15
      %s17 = sshll.u32 [#allocation2], 4
      %s18 = int_to_ptr.vmem [resolvable:$true] %s17
      %20 = dma.hbm_to_vmem [thread:$0]  %s16, 256, %s18, [#allocation3]
    $region5: #{tpu_custom_call.1} parent=1 // pred_fallthru
      _
    // Predicated region
    $region6: #{tpu_custom_call.1} parent=1 // pred_check
      _
    $region7: #{tpu_custom_call.1} parent=1 // pred_check_branch
      %22 = sbr.rel (0) target = $region9
    $region8: #{tpu_custom_call.1} parent=1 // pred_region
      %24 = vsyncadd [#allocation6], 0
      %s26 = sshll.u32 %s1, 4
      %s27 = int_to_ptr.hbm [resolvable:$true] %s26
      %s28 = sshll.u32 [#allocation5], 4
      %s29 = int_to_ptr.vmem [resolvable:$true] %s28
      %31 = dma.hbm_to_vmem [thread:$0]  %s27, 256, %s29, [#allocation6]
    $region9: #{tpu_custom_call.1} parent=1 // pred_fallthru
      _
    // Predicated region
    $region10: #{tpu_custom_call.1} parent=1 // pred_check
      _
    $region11: #{tpu_custom_call.1} parent=1 // pred_check_branch
      %33 = sbr.rel (0) target = $region13
    $region12: #{tpu_custom_call.1} parent=1 // pred_region
      %35 = dma.done [#allocation3], 256
    $region13: #{tpu_custom_call.1} parent=1 // pred_fallthru
      _
    // Predicated region
    $region14: #{tpu_custom_call.1} parent=1 // pred_check
      _
    $region15: #{tpu_custom_call.1} parent=1 // pred_check_branch
      %37 = sbr.rel (0) target = $region17
    $region16: #{tpu_custom_call.1} parent=1 // pred_region
      %39 = dma.done [#allocation6], 256
    $region17: #{tpu_custom_call.1} parent=1 // pred_fallthru
      _
    %v40 = vld [vmem:[#allocation2] sm:$0xff]
    %v41 = vld [vmem:[#allocation2 + $0x8] sm:$0xff]
    %v42 = vld [vmem:[#allocation5] sm:$0xff]
    %v43 = vld [vmem:[#allocation5 + $0x8] sm:$0xff]
    %v44 = vmul.f32 %v42, 2.0
    %v45 = vmul.f32 %v43, 2.0
    %v46 = vadd.f32 %v40, %v44
    %v47 = vadd.f32 %v41, %v45
    %48 = vst [vmem:[#allocation7] sm:$0xff] %v46
    %49 = vst [vmem:[#allocation7 + $0x8] sm:$0xff] %v47
    // Predicated region
    $region18: #{tpu_custom_call.1} parent=1 // pred_check
      _
    $region19: #{tpu_custom_call.1} parent=1 // pred_check_branch
      %51 = sbr.rel (0) target = $region21
    $region20: #{tpu_custom_call.1} parent=1 // pred_region
      %53 = vsyncadd [#allocation4], 0
      %s55 = sshll.u32 [#allocation7], 4
      %s56 = int_to_ptr.vmem [resolvable:$true] %s55
      %s57 = sshll.u32 %s2, 4
      %s58 = int_to_ptr.hbm [resolvable:$true] %s57
      %60 = dma.vmem_to_hbm [thread:$0]  %s56, 256, %s58, [#allocation4]
    $region21: #{tpu_custom_call.1} parent=1 // pred_fallthru
      _
    // Predicated region
    $region22: #{tpu_custom_call.1} parent=1 // pred_check
      _
    $region23: #{tpu_custom_call.1} parent=1 // pred_check_branch
      %62 = sbr.rel (0) target = $region25
    $region24: #{tpu_custom_call.1} parent=1 // pred_region
      %64 = dma.done [#allocation4], 256
    $region25: #{tpu_custom_call.1} parent=1 // pred_fallthru
      _
    %65 = vsyncpa [#allocation3], 1
    %66 = vsyncpa [#allocation6], 1
    %67 = vsyncpa [#allocation4], 1

</llo_original>
